<compile_context>
chip_gen: v7x
topology: tpu7x:2x2x1
jax: 0.10.0
libtpu: 0.0.40
codegen_flags: <defaults>
</compile_context>

<pallas_src>
import jax
import jax.numpy as jnp
from jax import lax
from jax.experimental import pallas as pl
from jax.experimental.pallas import tpu as pltpu


def _smooth_loss_kernel(x_ref, o_ref):
    # x_ref: (n_chns, TILE_F) tile of x in VMEM, native dtype.
    xf = x_ref[...].astype(jnp.float32)
    n, f = xf.shape

    zero_row = jnp.zeros((1, f), dtype=jnp.float32)
    x_prev = jnp.concatenate([zero_row, xf[:-1, :]], axis=0)   # x[i-1] (row 0 unused)
    x_next = jnp.concatenate([xf[1:, :], zero_row], axis=0)    # x[i+1] (0 for last row)

    y = 2.0 * xf - x_prev - x_next
    rows = lax.broadcasted_iota(jnp.int32, y.shape, 0)
    y = jnp.where(rows > 0, y, 0.0)                            # A[0, :] = 0

    partial = jnp.sum(y * y)                                   # per-tile partial sum
    # Lane-dense (8, 128) slab per tile -> unmasked vector stores.
    o_ref[...] = jnp.full(o_ref.shape, partial, dtype=jnp.float32)


def smooth_loss(x, n_chns, tile_f=4096):
    """x: (n_chns, features), any float dtype. Returns scalar f32 loss."""
    assert x.ndim == 2 and x.shape[0] == n_chns and n_chns >= 2
    feat = x.shape[1]

    # Lane-dense tile size (multiple of 128), capped at the (lane-rounded) width.
    lane_f = pl.cdiv(feat, 128) * 128
    tile = min(int(tile_f), int(lane_f))

    # Zero-pad features to a multiple of the tile; zero columns contribute 0.
    f_pad = pl.cdiv(feat, tile) * tile
    if f_pad != feat:
        x = jnp.pad(x, ((0, 0), (0, f_pad - feat)))
    num_tiles = f_pad // tile

    out = pl.pallas_call(
        _smooth_loss_kernel,
        out_shape=jax.ShapeDtypeStruct((num_tiles, 8, 128), jnp.float32),
        grid_spec=pltpu.PrefetchScalarGridSpec(
            num_scalar_prefetch=0,
            grid=(num_tiles,),
            in_specs=[pl.BlockSpec((n_chns, tile), lambda i: (0, i))],
            out_specs=pl.BlockSpec((1, 8, 128), lambda i: (i, 0, 0)),
        ),
        compiler_params=pltpu.CompilerParams(
            dimension_semantics=("parallel",),   # independent tiles -> v7x megacore
            vmem_limit_bytes=32 * 1024 * 1024,   # safe on v5e/v6e/v7x; tiles are tiny
        ),
    )(x)

    # Tiny final reduction over per-tile partial sums (outside the kernel).
    return jnp.sum(out[:, 0, 0])


if __name__ == "__main__":
    key = jax.random.PRNGKey(0)
    n_chns = 16
    feat = 1300  # deliberately not a multiple of 128/512 to exercise the pad path
    x = jax.random.normal(key, (n_chns, feat), dtype=jnp.float32)

    # Small tile so the demo exercises the multi-tile pipelined grid (3 tiles).
    loss = smooth_loss(x, n_chns, tile_f=512)
    jax.block_until_ready(loss)

    # Pure-JAX reference of the exact PyTorch math.
    diag = jnp.full((n_chns,), 2.0, dtype=jnp.float32)
    off = jnp.full((n_chns - 1,), -1.0, dtype=jnp.float32)
    A_ref = (jnp.diag(off, -1) + jnp.diag(diag, 0) + jnp.diag(off, 1)).at[0, :].set(0.0)
    ref = jnp.sum(jnp.square(A_ref @ x))
    assert jnp.allclose(loss, ref, rtol=1e-4, atol=1e-3), (loss, ref)

    print("KERNEL_OK")
</pallas_src>

<mosaic_0001>
module attributes {stable_mosaic.version = 11 : i64} {
  func.func @_smooth_loss_kernel(%arg0: i32, %arg1: memref<16x512xf32, #tpu.memory_space<vmem>>, %arg2: memref<1x8x128xf32, #tpu.memory_space<vmem>>) attributes {dimension_semantics = [#tpu.dimension_semantics<parallel>], iteration_bounds = array<i64: 3>, scalar_prefetch = 0 : i64, scratch_operands = 0 : i64, tpu.core_type = #tpu.core_type<tc>, window_params = [{transform_indices = @transform_0, window_bounds = array<i64: 16, 512>}, {transform_indices = @transform_1, window_bounds = array<i64: 1, 8, 128>}]} {
    %c0 = arith.constant 0 : index
    %c0_0 = arith.constant 0 : index
    %0 = vector.load %arg1[%c0, %c0_0] : memref<16x512xf32, #tpu.memory_space<vmem>>, vector<16x512xf32>
    %cst = arith.constant 0.000000e+00 : f32
    %1 = vector.broadcast %cst : f32 to vector<1x512xf32>
    %2 = vector.extract_strided_slice %0 {offsets = [0, 0], sizes = [15, 512], strides = [1, 1]} : vector<16x512xf32> to vector<15x512xf32>
    %3 = tpu.concatenate %1, %2 in 0 : vector<1x512xf32>, vector<15x512xf32> -> vector<16x512xf32>
    %4 = vector.extract_strided_slice %0 {offsets = [1, 0], sizes = [15, 512], strides = [1, 1]} : vector<16x512xf32> to vector<15x512xf32>
    %5 = tpu.concatenate %4, %1 in 0 : vector<15x512xf32>, vector<1x512xf32> -> vector<16x512xf32>
    %cst_1 = arith.constant 2.000000e+00 : f32
    %6 = vector.broadcast %cst_1 : f32 to vector<16x512xf32>
    %7 = arith.mulf %6, %0 : vector<16x512xf32>
    %8 = arith.subf %7, %3 : vector<16x512xf32>
    %9 = arith.subf %8, %5 : vector<16x512xf32>
    %10 = tpu.iota {dimensions = array<i32: 0>} : vector<16x512xi32>
    %c0_i32 = arith.constant 0 : i32
    %11 = vector.broadcast %c0_i32 : i32 to vector<16x512xi32>
    %12 = arith.cmpi sgt, %10, %11 : vector<16x512xi32>
    %cst_2 = arith.constant 0.000000e+00 : f32
    %13 = vector.broadcast %cst_2 : f32 to vector<16x512xf32>
    %14 = arith.select %12, %9, %13 : vector<16x512xi1>, vector<16x512xf32>
    %15 = arith.mulf %14, %14 : vector<16x512xf32>
    %16 = vector.shape_cast %15 : vector<16x512xf32> to vector<1x16x512xf32>
    %cst_3 = arith.constant dense<0.000000e+00> : vector<1xf32>
    %17 = vector.multi_reduction <add>, %16, %cst_3 [1, 2] : vector<1x16x512xf32> to vector<1xf32>
    %18 = vector.shape_cast %17 : vector<1xf32> to vector<1x1x1xf32>
    %19 = vector.extract %18[0, 0, 0] : f32 from vector<1x1x1xf32>
    %20 = vector.broadcast %19 : f32 to vector<1x8x128xf32>
    %c0_4 = arith.constant 0 : index
    %c0_5 = arith.constant 0 : index
    %c0_6 = arith.constant 0 : index
    %21 = vector.load %arg2[%c0_4, %c0_5, %c0_6] : memref<1x8x128xf32, #tpu.memory_space<vmem>>, vector<1x8x128xf32>
    tpu.vector_store %arg2[%c0_4, %c0_5, %c0_6], %20 {strides = array<i32>} : memref<1x8x128xf32, #tpu.memory_space<vmem>>, vector<1x8x128xf32>,
    return
  }
  func.func @transform_0(%arg0: i32) -> (i32, i32) {
    %c0_i32 = arith.constant 0 : i32
    %c0_i32_0 = arith.constant 0 : i32
    return %c0_i32, %arg0 : i32, i32
  }
  func.func @transform_1(%arg0: i32) -> (i32, i32, i32) {
    %c0_i32 = arith.constant 0 : i32
    %c0_i32_0 = arith.constant 0 : i32
    %c0_i32_1 = arith.constant 0 : i32
    return %arg0, %c0_i32, %c0_i32_0 : i32, i32, i32
  }
}

</mosaic_0001>

<llo_original>
// kernel: tpu_custom_call.1
$region0: #{tpu_custom_call.1}
  #allocation0 [shape = 'u32[]', space=smem, size = 0x4, offset = 0x4, fixed_abs, tag = 'smem constant byte address 0x4 - core index']
  #allocation1 [shape = 'u32[144,128]{1,0:T(1,128)}', space=vmem, size = 0x12000, scoped, tag = 'internal scratch']
  %s0 = inlined_call_operand.hbm [shape: f32[16,1536], index: 0, kind: input, shape index: {}]
  %s1 = inlined_call_operand.hbm [shape: f32[3,8,128], index: 1, kind: output, shape index: {}]
  %s2 = sld [smem:[#allocation0]]
  $region41: #{tpu_custom_call.1} parent=0
    _
  %s4 = ssub.s32 1, %s2
  %s5 = scalar_select 0, %s4, %s2
  $region1: #{tpu_custom_call.1} parent=0
    #allocation2 [shape = 'u8[65536]{0}', space=vmem, size = 0x10000, scoped, tag = 'input window, operand 0']
    #allocation3 [shape = 's32[2]{0}', space=sflag, size = 0x8, scoped, tag = 'scoped memory for tpu_custom_call.1']
    #allocation4 [shape = 's32[2]{0}', space=sflag, size = 0x8, scoped, tag = 'scoped memory for tpu_custom_call.1']
    #allocation5 [shape = 'u8[8192]{0}', space=vmem, size = 0x2000, scoped, tag = 'output window, operand 0']
    %6 = vsyncpa [#allocation3], 0
    %s7 = scalar_lea.sflag [#allocation3], 1
    %8 = vsyncpa %s7, 0
    %9 = vsyncpa [#allocation4], 0
    %s10 = scalar_lea.sflag [#allocation4], 1
    %11 = vsyncpa %s10, 0
    loop: start=0, step=1, limit=5
    $region2: #{tpu_custom_call.1} parent=1 // loop_pre_header
      _
    $region3: #{tpu_custom_call.1} parent=1 // loop_header
      %s13 = sphi 0, %s17
      %p14 = scmp.ge.s32.totalorder %s13, 5
      %s23 = sphi 0, %s25
      %s26 = sphi 0, %s23
      %s27 = sphi 0, %s26
      %s43 = sphi 0, %s27
      %s49 = sphi 0, %s51
      %s52 = sphi 0, %s49
      %s53 = sphi 0, %s52
      %s69 = sphi 0, %s53
    $region4: #{tpu_custom_call.1} parent=1 // loop_header_branch
      %16 = sbr.rel (%p14) target = $region8
    $region5: #{tpu_custom_call.1} parent=1 // loop_body
      %s18 = ssub.s32 %s13, 1
      %s19 = ssub.s32 %s13, 2
      %s20 = sadd.s32 %s13, 1
      %s21 = ssub.s32 %s13, %s20
      %p22 = scmp.eq.s32.totalorder %s21, 0
      %s24 = sadd.s32 %s23, 1
      %s25 = scalar_select %p22, %s23, %s24
      %p28 = pneg %p22
      %p29 = scmp.eq.s32.totalorder %s13, 2
      %p30 = por %p28, %p29
      %p31 = scmp.ne.s32.totalorder %s23, %s26
      %p32 = scmp.eq.s32.totalorder %s13, 0
      %p33 = por %p31, %p32
      %p34 = scmp.ne.s32.totalorder %s23, %s26
      %p35 = scmp.eq.s32.totalorder %s18, 2
      %p36 = por %p34, %p35
      %p37 = scmp.ne.s32.totalorder %s26, %s27
      %p38 = scmp.eq.s32.totalorder %s18, 0
      %p39 = por %p37, %p38
      %p40 = scmp.ne.s32.totalorder %s26, %s27
      %p41 = scmp.eq.s32.totalorder %s19, 2
      %p42 = por %p40, %p41
      %p44 = scmp.ne.s32.totalorder %s27, %s43
      %p45 = scmp.eq.s32.totalorder %s19, 0
      %p46 = por %p44, %p45
      %s47 = ssub.s32 %s13, %s20
      %p48 = scmp.eq.s32.totalorder %s47, 0
      %s50 = sadd.s32 %s49, 1
      %s51 = scalar_select %p48, %s49, %s50
      %p54 = pneg %p48
      %p55 = scmp.eq.s32.totalorder %s13, 2
      %p56 = por %p54, %p55
      %p57 = scmp.ne.s32.totalorder %s49, %s52
      %p58 = scmp.eq.s32.totalorder %s13, 0
      %p59 = por %p57, %p58
      %p60 = scmp.ne.s32.totalorder %s49, %s52
      %p61 = scmp.eq.s32.totalorder %s18, 2
      %p62 = por %p60, %p61
      %p63 = scmp.ne.s32.totalorder %s52, %s53
      %p64 = scmp.eq.s32.totalorder %s18, 0
      %p65 = por %p63, %p64
      %p66 = scmp.ne.s32.totalorder %s52, %s53
      %p67 = scmp.eq.s32.totalorder %s19, 2
      %p68 = por %p66, %p67
      %p70 = scmp.ne.s32.totalorder %s53, %s69
      %p71 = scmp.eq.s32.totalorder %s19, 0
      %p72 = por %p70, %p71
      %p73 = scmp.le.s32.totalorder 1, %s13
      %p74 = scmp.lt.s32.totalorder %s13, 4
      %p75 = pnand %p73, %p74
      %p76 = pneg %p75
      // Predicated region
      $region9: #{tpu_custom_call.1} parent=5 // pred_check
        _
      $region10: #{tpu_custom_call.1} parent=5 // pred_check_branch
        %78 = sbr.rel (%p75) target = $region12
      $region11: #{tpu_custom_call.1} parent=5 // pred_region
        %s79 = ssub.s32 %s13, 1
      $region12: #{tpu_custom_call.1} parent=5 // pred_fallthru
        _
      %p80 = scmp.lt.s32.totalorder %s13, 3
      // Predicated region
      $region13: #{tpu_custom_call.1} parent=5 // pred_check
        %p81 = pneg %p80
      $region14: #{tpu_custom_call.1} parent=5 // pred_check_branch
        %83 = sbr.rel (%p81) target = $region16
      $region15: #{tpu_custom_call.1} parent=5 // pred_region
        // Predicated region
        $region17: #{tpu_custom_call.1} parent=15 // pred_check
          %p84 = pneg %p33
        $region18: #{tpu_custom_call.1} parent=15 // pred_check_branch
          %86 = sbr.rel (%p84) target = $region20
        $region19: #{tpu_custom_call.1} parent=15 // pred_region
          %s87 = sand.u32 %s23, 1
          %s88 = scalar_lea.sflag [#allocation3], %s87
          %s89 = sand.u32 %s23, 1
          %s90 = smul.addr %s89, 64
          %s91 = scalar_lea.vmem [#allocation2], %s90
          %s92 = smul.u32 4, %s13
          %s94 = ssub.s32 1024, 1024
          %95 = vsyncadd %s88, %s94
          %s96 = smul.addr %s92, 128
          %s97 = scalar_lea.hbm %s0, %s96
          %s98 = sshll.u32 %s91, 4
          %s99 = int_to_ptr.vmem [resolvable:$true] %s98
          %104 = dma.hbm_to_vmem [thread:$0]  %s97, 1024, %s99, %s88, 1536, 512, 32
        $region20: #{tpu_custom_call.1} parent=15 // pred_fallthru
          _
      $region16: #{tpu_custom_call.1} parent=5 // pred_fallthru
        _
      %p105 = scmp.le.s32.totalorder 1, %s13
      %p106 = scmp.lt.s32.totalorder %s13, 4
      %p107 = pnand %p105, %p106
      %p108 = pneg %p107
      // Predicated region
      $region21: #{tpu_custom_call.1} parent=5 // pred_check
        _
      $region22: #{tpu_custom_call.1} parent=5 // pred_check_branch
        %110 = sbr.rel (%p107) target = $region24
      $region23: #{tpu_custom_call.1} parent=5 // pred_region
        %s111 = ssub.s32 %s13, 1
        %s112 = sand.u32 %s26, 1
        %s113 = scalar_lea.sflag [#allocation3], %s112
        %s114 = sand.u32 %s26, 1
        %s115 = smul.addr %s114, 64
        %s116 = scalar_lea.vmem [#allocation2], %s115
        // Predicated region
        $region25: #{tpu_custom_call.1} parent=23 // pred_check
          %p117 = pneg %p39
        $region26: #{tpu_custom_call.1} parent=23 // pred_check_branch
          %119 = sbr.rel (%p117) target = $region28
        $region27: #{tpu_custom_call.1} parent=23 // pred_region
          %120 = dma.done %s113, 1024
        $region28: #{tpu_custom_call.1} parent=23 // pred_fallthru
          _
        %s121 = sand.u32 %s26, 1
        %s122 = scalar_lea.sflag [#allocation3], %s121
        %s123 = sand.u32 %s26, 1
        %s124 = smul.addr %s123, 64
        %s125 = scalar_lea.vmem [#allocation2], %s124
        %p126 = pneg %p39
        %p127 = pneg %p36
        %p128 = pneg %p65
        %p129 = pneg %p62
        %s130 = sand.u32 %s52, 1
        %s131 = scalar_lea.sflag [#allocation4], %s130
        %s132 = sand.u32 %s52, 1
        %s133 = smul.addr %s132, 8
        %s134 = scalar_lea.vmem [#allocation5], %s133
        %s135 = smul.u32 4, %s18
        %v136 = vld [vmem:[%s116] sm:$0xff]
        %v137 = vld [vmem:[%s116 + $0x8] sm:$0xff]
        %v138 = vld [vmem:[%s116 + $0x10] sm:$0xff]
        %v139 = vld [vmem:[%s116 + $0x18] sm:$0xff]
        %v140 = vld [vmem:[%s116 + $0x20] sm:$0xff]
        %v141 = vld [vmem:[%s116 + $0x28] sm:$0xff]
        %v142 = vld [vmem:[%s116 + $0x30] sm:$0xff]
        %v143 = vld [vmem:[%s116 + $0x38] sm:$0xff]
        %vm152 = vcmask 1040384
        %v153 = vrot.slane %v136, 7
        %v154 = vrot.slane %v137, 7
        %v155 = vrot.slane %v138, 7
        %v156 = vrot.slane %v139, 7
        %v157 = vrot.slane %v140, 7
        %v158 = vsel %vm152, %v153, %v157
        %v159 = vrot.slane %v141, 7
        %v160 = vsel %vm152, %v154, %v159
        %v161 = vrot.slane %v142, 7
        %v162 = vsel %vm152, %v155, %v161
        %v163 = vrot.slane %v143, 7
        %v164 = vsel %vm152, %v156, %v163
        %v173 = vsel %vm152, 0.0, %v153
        %v174 = vsel %vm152, 0.0, %v154
        %v175 = vsel %vm152, 0.0, %v155
        %v176 = vsel %vm152, 0.0, %v156
        %vm177 = vcmask 1046528
        %v178 = vrot.slane %v136, 1
        %v179 = vrot.slane %v140, 1
        %v180 = vsel %vm177, %v178, %v179
        %v181 = vrot.slane %v137, 1
        %v182 = vrot.slane %v141, 1
        %v183 = vsel %vm177, %v181, %v182
        %v184 = vrot.slane %v138, 1
        %v185 = vrot.slane %v142, 1
        %v186 = vsel %vm177, %v184, %v185
        %v187 = vrot.slane %v139, 1
        %v188 = vrot.slane %v143, 1
        %v189 = vsel %vm177, %v187, %v188
        %v198 = vsel %vm177, %v179, 0.0
        %v199 = vsel %vm177, %v182, 0.0
        %v200 = vsel %vm177, %v185, 0.0
        %v201 = vsel %vm177, %v188, 0.0
        %v202 = vmul.f32 %v136, 2.0
        %v203 = vmul.f32 %v137, 2.0
        %v204 = vmul.f32 %v138, 2.0
        %v205 = vmul.f32 %v139, 2.0
        %v206 = vmul.f32 %v140, 2.0
        %v207 = vmul.f32 %v141, 2.0
        %v208 = vmul.f32 %v142, 2.0
        %v209 = vmul.f32 %v143, 2.0
        %v210 = vsub.f32 %v202, %v173
        %v211 = vsub.f32 %v203, %v174
        %v212 = vsub.f32 %v204, %v175
        %v213 = vsub.f32 %v205, %v176
        %v214 = vsub.f32 %v206, %v158
        %v215 = vsub.f32 %v207, %v160
        %v216 = vsub.f32 %v208, %v162
        %v217 = vsub.f32 %v209, %v164
        %v218 = vsub.f32 %v210, %v180
        %v219 = vsub.f32 %v211, %v183
        %v220 = vsub.f32 %v212, %v186
        %v221 = vsub.f32 %v213, %v189
        %v222 = vsub.f32 %v214, %v198
        %v223 = vsub.f32 %v215, %v199
        %v224 = vsub.f32 %v216, %v200
        %v225 = vsub.f32 %v217, %v201
        %v226 = vlaneseq
        %v227 = vshrl.u32 %v226, 7
        %v228 = vadd.s32 %v227, 8
        %vm229 = vcmp.gt.s32.totalorder %v227, 0
        %vm230 = vcmp.gt.s32.totalorder %v228, 0
        %v231 = vsel %vm229, %v218, 0.0
        %v232 = vsel %vm229, %v219, 0.0
        %v233 = vsel %vm229, %v220, 0.0
        %v234 = vsel %vm229, %v221, 0.0
        %v235 = vsel %vm230, %v222, 0.0
        %v236 = vsel %vm230, %v223, 0.0
        %v237 = vsel %vm230, %v224, 0.0
        %v238 = vsel %vm230, %v225, 0.0
        %v239 = vmul.f32 %v231, %v231
        %v240 = vmul.f32 %v232, %v232
        %v241 = vmul.f32 %v233, %v233
        %v242 = vmul.f32 %v234, %v234
        %v243 = vmul.f32 %v235, %v235
        %v244 = vmul.f32 %v236, %v236
        %v245 = vmul.f32 %v237, %v237
        %v246 = vmul.f32 %v238, %v238
        %v247 = vadd.f32 %v239, %v240
        %v248 = vadd.f32 %v247, %v241
        %v249 = vadd.f32 %v248, %v242
        %v250 = vadd.f32 %v249, %v243
        %v251 = vadd.f32 %v250, %v244
        %v252 = vadd.f32 %v251, %v245
        %v253 = vadd.f32 %v252, %v246
        %254 = vadd.xlane.f32.xlu0 %v253
        %v255 = vpop.xlane.xlu0 %254
        %v256 = vrot.slane %v255, 4
        %v257 = vadd.f32 %v255, %v256
        %v258 = vrot.slane %v257, 2
        %v259 = vadd.f32 %v257, %v258
        %v260 = vrot.slane %v259, 1
        %v261 = vadd.f32 %v259, %v260
        %s262 = vtos %v261
        %v263 = vstv %s262
        %264 = vst [vmem:[%s134] sm:$0xff] %v263
        %s265 = sand.u32 %s52, 1
        %s266 = scalar_lea.sflag [#allocation4], %s265
        %s267 = sand.u32 %s52, 1
        %s268 = smul.addr %s267, 8
        %s269 = scalar_lea.vmem [#allocation5], %s268
        // Predicated region
        $region29: #{tpu_custom_call.1} parent=23 // pred_check
          %p270 = pneg %p62
        $region30: #{tpu_custom_call.1} parent=23 // pred_check_branch
          %272 = sbr.rel (%p270) target = $region32
        $region31: #{tpu_custom_call.1} parent=23 // pred_region
          %s274 = ssub.s32 128, 128
          %275 = vsyncadd %s266, %s274
          %s276 = smul.addr %s18, 128
          %s277 = scalar_lea.hbm %s1, %s276
          %s279 = sshll.u32 %s269, 4
          %s280 = int_to_ptr.vmem [resolvable:$true] %s279
          %282 = dma.vmem_to_hbm [thread:$0]  %s280, 128, %s277, %s266
        $region32: #{tpu_custom_call.1} parent=23 // pred_fallthru
          _
      $region24: #{tpu_custom_call.1} parent=5 // pred_fallthru
        _
      %p283 = scmp.le.s32.totalorder 2, %s13
      // Predicated region
      $region33: #{tpu_custom_call.1} parent=5 // pred_check
        %p284 = pneg %p283
      $region34: #{tpu_custom_call.1} parent=5 // pred_check_branch
        %286 = sbr.rel (%p284) target = $region36
      $region35: #{tpu_custom_call.1} parent=5 // pred_region
        %s287 = ssub.s32 %s13, 2
        // Predicated region
        $region37: #{tpu_custom_call.1} parent=35 // pred_check
          %p288 = pneg %p68
        $region38: #{tpu_custom_call.1} parent=35 // pred_check_branch
          %290 = sbr.rel (%p288) target = $region40
        $region39: #{tpu_custom_call.1} parent=35 // pred_region
          %s291 = sand.u32 %s53, 1
          %s292 = scalar_lea.sflag [#allocation4], %s291
          %s293 = sand.u32 %s53, 1
          %s294 = smul.addr %s293, 8
          %s295 = scalar_lea.vmem [#allocation5], %s294
          %296 = dma.done %s292, 128
        $region40: #{tpu_custom_call.1} parent=35 // pred_fallthru
          _
      $region36: #{tpu_custom_call.1} parent=5 // pred_fallthru
        _
    $region6: #{tpu_custom_call.1} parent=1 // loop_footer
      %s17 = sadd.s32 1, %s13
    $region7: #{tpu_custom_call.1} parent=1 // loop_footer_branch
      %12 = sbr.rel target = $region3
    $region8: #{tpu_custom_call.1} parent=1 // loop_exit
      _
    %297 = vsyncpa [#allocation3], 1
    %s298 = scalar_lea.sflag [#allocation3], 1
    %299 = vsyncpa %s298, 1
    %300 = vsyncpa [#allocation4], 1
    %s301 = scalar_lea.sflag [#allocation4], 1
    %302 = vsyncpa %s301, 1

</llo_original>
